<compile_context>
chip_gen: v5e
topology: v5e:2x2
jax: 0.10.0
libtpu: 0.0.40
codegen_flags: <defaults>
</compile_context>

<pallas_src>
import jax
import jax.numpy as jnp
from jax.experimental import pallas as pl
from jax.experimental.pallas import tpu as pltpu


def _modulator_kernel(inp_ref, beh_hbm_ref, pup_hbm_ref, out_ref):
    """Identity modulation of one (1, tN, T) tile.

    inp_ref     : (1, tN, T) response-logit tile in VMEM
    beh_hbm_ref : (B, 2, T) behavior array, raw HBM ref (NOT DMA'd; unused)
    pup_hbm_ref : (B, 2, T) pupil-center array, raw HBM ref (NOT DMA'd; unused)
    out_ref     : (1, tN, T) output tile (HBM buffer aliases the input)
    """
    # Base Modulator defines no transformation -> pass-through.
    # (beh_hbm_ref / pup_hbm_ref are available for a concrete subclass to DMA
    #  and use on the VPU.)
    out_ref[...] = inp_ref[...]


def _tile_rows(n: int, t: int, itemsize: int,
               target_bytes: int = 2 * 1024 * 1024) -> int:
    """Pick a sublane (N-axis) tile: multiple of 8, ~target_bytes per block.

    Sized so input + output blocks, each double-buffered (4 live copies),
    stay far under the scoped-VMEM budget on v5e/v6e/v7x.
    """
    rows = (target_bytes // max(1, t * itemsize)) // 8 * 8
    rows = max(8, rows)
    if rows >= n:
        return n  # whole axis -> always a legal block shape
    return rows   # multiple of 8 -> legal; last partial block is masked


def modulator_forward(inputs: jax.Array,
                      behaviors: jax.Array,
                      pupil_centers: jax.Array,
                      *,
                      use_kernel: bool = True) -> jax.Array:
    """Pallas wrapper. inputs: (B, N, T); behaviors/pupil_centers: (B, 2, T).

    For the base-class identity semantics, callers that do not need the Pallas
    scaffold can set use_kernel=False (returns `inputs` with zero HBM traffic).
    """
    B, N, T = inputs.shape
    assert behaviors.shape == (B, 2, T)
    assert pupil_centers.shape == (B, 2, T)

    if not use_kernel:
        # Identity path: no kernel launch, no bytes moved.
        return inputs

    itemsize = jnp.dtype(inputs.dtype).itemsize
    tn = _tile_rows(N, T, itemsize)
    grid = (B, pl.cdiv(N, tn))

    return pl.pallas_call(
        _modulator_kernel,
        out_shape=jax.ShapeDtypeStruct((B, N, T), inputs.dtype),
        grid_spec=pltpu.PrefetchScalarGridSpec(
            num_scalar_prefetch=0,
            grid=grid,
            in_specs=[
                # Only the logits are tiled + DMA'd into VMEM.
                pl.BlockSpec((1, tn, T), lambda b, n: (b, n, 0)),
                # Covariates are unused by the base class: leave them in HBM
                # (no DMA, no double-buffered VMEM) but keep them in the
                # signature for concrete subclasses.
                pl.BlockSpec(memory_space=pl.ANY),
                pl.BlockSpec(memory_space=pl.ANY),
            ],
            out_specs=pl.BlockSpec((1, tn, T), lambda b, n: (b, n, 0)),
        ),
        # Identity: let the output reuse the input HBM buffer.
        input_output_aliases={0: 0},
        # Pure-bandwidth hint for the XLA scheduler.
        cost_estimate=pl.CostEstimate(
            flops=0,
            transcendentals=0,
            bytes_accessed=2 * B * N * T * itemsize,
        ),
        compiler_params=pltpu.CompilerParams(
            # Both axes independent -> megacore/2-TC sharding on v7x.
            dimension_semantics=("parallel", "parallel"),
            vmem_limit_bytes=32 * 1024 * 1024,
        ),
    )(inputs, behaviors, pupil_centers)


if __name__ == "__main__":
    key = jax.random.PRNGKey(0)
    k1, k2, k3 = jax.random.split(key, 3)

    # Small shapes consistent with the module: N -> sublanes (multiple of 8),
    # T -> lanes (multiple of 128 for dense, unmasked stores).
    B, N, T = 2, 48, 128
    inputs = jax.random.normal(k1, (B, N, T), dtype=jnp.float32)
    behaviors = jax.random.normal(k2, (B, 2, T), dtype=jnp.float32)
    pupil_centers = jax.random.normal(k3, (B, 2, T), dtype=jnp.float32)

    out = modulator_forward(inputs, behaviors, pupil_centers)
    out = jax.block_until_ready(out)

    assert out.shape == inputs.shape, (out.shape, inputs.shape)
    assert out.dtype == inputs.dtype
    # Base-class modulator is the identity on the logits.
    assert bool(jnp.allclose(out, inputs))

    print("KERNEL_OK")
</pallas_src>

<mosaic_0001>
module attributes {stable_mosaic.version = 11 : i64} {
  func.func @_modulator_kernel(%arg0: i32, %arg1: i32, %arg2: memref<1x48x128xf32, #tpu.memory_space<vmem>>, %arg3: memref<2x2x128xf32, #tpu.memory_space<any>>, %arg4: memref<2x2x128xf32, #tpu.memory_space<any>>, %arg5: memref<1x48x128xf32, #tpu.memory_space<vmem>>) attributes {dimension_semantics = [#tpu.dimension_semantics<parallel>, #tpu.dimension_semantics<parallel>], iteration_bounds = array<i64: 2, 1>, scalar_prefetch = 0 : i64, scratch_operands = 0 : i64, tpu.core_type = #tpu.core_type<tc>, window_params = [{transform_indices = @transform_0, window_bounds = array<i64: 1, 48, 128>}, {}, {}, {transform_indices = @transform_3, window_bounds = array<i64: 1, 48, 128>}]} {
    %c0 = arith.constant 0 : index
    %c0_0 = arith.constant 0 : index
    %c0_1 = arith.constant 0 : index
    %0 = vector.load %arg2[%c0, %c0_0, %c0_1] : memref<1x48x128xf32, #tpu.memory_space<vmem>>, vector<1x48x128xf32>
    %c0_2 = arith.constant 0 : index
    %c0_3 = arith.constant 0 : index
    %c0_4 = arith.constant 0 : index
    %1 = vector.load %arg5[%c0_2, %c0_3, %c0_4] : memref<1x48x128xf32, #tpu.memory_space<vmem>>, vector<1x48x128xf32>
    tpu.vector_store %arg5[%c0_2, %c0_3, %c0_4], %0 {strides = array<i32>} : memref<1x48x128xf32, #tpu.memory_space<vmem>>, vector<1x48x128xf32>,
    return
  }
  func.func @transform_0(%arg0: i32, %arg1: i32) -> (i32, i32, i32) {
    %c0_i32 = arith.constant 0 : i32
    %c0_i32_0 = arith.constant 0 : i32
    return %arg0, %arg1, %c0_i32 : i32, i32, i32
  }
  func.func @transform_3(%arg0: i32, %arg1: i32) -> (i32, i32, i32) {
    %c0_i32 = arith.constant 0 : i32
    %c0_i32_0 = arith.constant 0 : i32
    return %arg0, %arg1, %c0_i32 : i32, i32, i32
  }
}

</mosaic_0001>

<llo_original>
// kernel: tpu_custom_call.1
$region0: #{tpu_custom_call.1}
  #allocation0 [shape = 'u32[]', space=smem, size = 0x4, offset = 0x4, fixed_abs, tag = 'smem constant byte address 0x4 - core index']
  #allocation1 [shape = 'u32[72,128]{1,0:T(1,128)}', space=vmem, size = 0x9000, scoped, tag = 'internal scratch']
  %s0 = inlined_call_operand.hbm [shape: f32[2,48,128], index: 0, kind: input, shape index: {}, may-alias: {0,3}]
  %s1 = inlined_call_operand.vmem [shape: f32[2,2,128], index: 1, kind: input, shape index: {}]
  %s2 = inlined_call_operand.vmem [shape: f32[2,2,128], index: 2, kind: input, shape index: {}]
  %s3 = inlined_call_operand.hbm [shape: f32[2,48,128], index: 3, kind: output, shape index: {}, may-alias: {0,3}]
  %s4 = sld [smem:[#allocation0]]
  $region41: #{tpu_custom_call.1} parent=0
    _
  %s6 = ssub.s32 1, %s4
  %s7 = scalar_select 0, %s6, %s4
  $region1: #{tpu_custom_call.1} parent=0
    #allocation2 [shape = 'u8[49152]{0}', space=vmem, size = 0xc000, scoped, tag = 'input window, operand 0']
    #allocation3 [shape = 's32[2]{0}', space=sflag, size = 0x8, scoped, tag = 'scoped memory for tpu_custom_call.1']
    #allocation4 [shape = 's32[2]{0}', space=sflag, size = 0x8, scoped, tag = 'scoped memory for tpu_custom_call.1']
    #allocation5 [shape = 'u8[49152]{0}', space=vmem, size = 0xc000, scoped, tag = 'output window, operand 0']
    %8 = vsyncpa [#allocation3], 0
    %s9 = scalar_lea.sflag [#allocation3], 1
    %10 = vsyncpa %s9, 0
    %11 = vsyncpa [#allocation4], 0
    %s12 = scalar_lea.sflag [#allocation4], 1
    %13 = vsyncpa %s12, 0
    loop: start=0, step=1, limit=4
    $region2: #{tpu_custom_call.1} parent=1 // loop_pre_header
      _
    $region3: #{tpu_custom_call.1} parent=1 // loop_header
      %s15 = sphi 0, %s19
      %p16 = scmp.ge.s32.totalorder %s15, 4
      %s22 = sphi 0, %s34
      %s23 = sphi 0, %s30
      %s24 = sphi 0, %s22
      %s25 = sphi 0, %s23
      %s26 = sphi 0, %s24
      %s27 = sphi 0, %s25
      %s39 = sphi 0, %s41
      %s42 = sphi 0, %s39
      %s43 = sphi 0, %s42
      %s59 = sphi 0, %s43
      %s67 = sphi 0, %s69
      %s70 = sphi 0, %s67
      %s71 = sphi 0, %s70
      %s87 = sphi 0, %s71
    $region4: #{tpu_custom_call.1} parent=1 // loop_header_branch
      %18 = sbr.rel (%p16) target = $region8
    $region5: #{tpu_custom_call.1} parent=1 // loop_body
      %s20 = ssub.s32 %s15, 1
      %s21 = ssub.s32 %s15, 2
      %s28 = sadd.s32 1, %s23
      %p29 = scmp.ge.s32.totalorder %s28, 1
      %s30 = scalar_select %p29, 0, %s28
      %s31 = sadd.s32 1, %s22
      %s32 = scalar_select %p29, %s31, %s22
      %p33 = scmp.ge.s32.totalorder %s32, 2
      %s34 = scalar_select %p33, 0, %s32
      %s35 = ssub.s32 %s22, %s34
      %s36 = ssub.s32 %s23, %s30
      %s37 = sor.u32 %s35, %s36
      %p38 = scmp.eq.s32.totalorder %s37, 0
      %s40 = sadd.s32 %s39, 1
      %s41 = scalar_select %p38, %s39, %s40
      %p44 = pneg %p38
      %p45 = scmp.eq.s32.totalorder %s15, 1
      %p46 = por %p44, %p45
      %p47 = scmp.ne.s32.totalorder %s39, %s42
      %p48 = scmp.eq.s32.totalorder %s15, 0
      %p49 = por %p47, %p48
      %p50 = scmp.ne.s32.totalorder %s39, %s42
      %p51 = scmp.eq.s32.totalorder %s20, 1
      %p52 = por %p50, %p51
      %p53 = scmp.ne.s32.totalorder %s42, %s43
      %p54 = scmp.eq.s32.totalorder %s20, 0
      %p55 = por %p53, %p54
      %p56 = scmp.ne.s32.totalorder %s42, %s43
      %p57 = scmp.eq.s32.totalorder %s21, 1
      %p58 = por %p56, %p57
      %p60 = scmp.ne.s32.totalorder %s43, %s59
      %p61 = scmp.eq.s32.totalorder %s21, 0
      %p62 = por %p60, %p61
      %s63 = ssub.s32 %s22, %s34
      %s64 = ssub.s32 %s23, %s30
      %s65 = sor.u32 %s63, %s64
      %p66 = scmp.eq.s32.totalorder %s65, 0
      %s68 = sadd.s32 %s67, 1
      %s69 = scalar_select %p66, %s67, %s68
      %p72 = pneg %p66
      %p73 = scmp.eq.s32.totalorder %s15, 1
      %p74 = por %p72, %p73
      %p75 = scmp.ne.s32.totalorder %s67, %s70
      %p76 = scmp.eq.s32.totalorder %s15, 0
      %p77 = por %p75, %p76
      %p78 = scmp.ne.s32.totalorder %s67, %s70
      %p79 = scmp.eq.s32.totalorder %s20, 1
      %p80 = por %p78, %p79
      %p81 = scmp.ne.s32.totalorder %s70, %s71
      %p82 = scmp.eq.s32.totalorder %s20, 0
      %p83 = por %p81, %p82
      %p84 = scmp.ne.s32.totalorder %s70, %s71
      %p85 = scmp.eq.s32.totalorder %s21, 1
      %p86 = por %p84, %p85
      %p88 = scmp.ne.s32.totalorder %s71, %s87
      %p89 = scmp.eq.s32.totalorder %s21, 0
      %p90 = por %p88, %p89
      %p91 = scmp.le.s32.totalorder 1, %s15
      %p92 = scmp.lt.s32.totalorder %s15, 3
      %p93 = pnand %p91, %p92
      %p94 = pneg %p93
      // Predicated region
      $region9: #{tpu_custom_call.1} parent=5 // pred_check
        _
      $region10: #{tpu_custom_call.1} parent=5 // pred_check_branch
        %96 = sbr.rel (%p93) target = $region12
      $region11: #{tpu_custom_call.1} parent=5 // pred_region
        %s97 = ssub.s32 %s15, 1
      $region12: #{tpu_custom_call.1} parent=5 // pred_fallthru
        _
      %p98 = scmp.lt.s32.totalorder %s15, 2
      // Predicated region
      $region13: #{tpu_custom_call.1} parent=5 // pred_check
        %p99 = pneg %p98
      $region14: #{tpu_custom_call.1} parent=5 // pred_check_branch
        %101 = sbr.rel (%p99) target = $region16
      $region15: #{tpu_custom_call.1} parent=5 // pred_region
        // Predicated region
        $region17: #{tpu_custom_call.1} parent=15 // pred_check
          %p102 = pneg %p49
        $region18: #{tpu_custom_call.1} parent=15 // pred_check_branch
          %104 = sbr.rel (%p102) target = $region20
        $region19: #{tpu_custom_call.1} parent=15 // pred_region
          %s105 = sand.u32 %s39, 1
          %s106 = scalar_lea.sflag [#allocation3], %s105
          %s107 = sand.u32 %s39, 1
          %s108 = smul.addr %s107, 48
          %s109 = scalar_lea.vmem [#allocation2], %s108
          %s110 = smul.u32 6, %s23
          %112 = vsyncadd %s106, 0
          %s113 = smul.addr %s22, 6
          %s114 = sadd.s32 %s110, %s113
          %s115 = smul.addr %s114, 8
          %s116 = scalar_lea.hbm %s0, %s115
          %s117 = sshll.u32 %s116, 4
          %s118 = int_to_ptr.hbm [resolvable:$true] %s117
          %s119 = sshll.u32 %s109, 4
          %s120 = int_to_ptr.vmem [resolvable:$true] %s119
          %125 = dma.hbm_to_vmem [thread:$0]  %s118, 768, %s120, %s106, 128, 128, 8
        $region20: #{tpu_custom_call.1} parent=15 // pred_fallthru
          _
      $region16: #{tpu_custom_call.1} parent=5 // pred_fallthru
        _
      %p126 = scmp.le.s32.totalorder 1, %s15
      %p127 = scmp.lt.s32.totalorder %s15, 3
      %p128 = pnand %p126, %p127
      %p129 = pneg %p128
      // Predicated region
      $region21: #{tpu_custom_call.1} parent=5 // pred_check
        _
      $region22: #{tpu_custom_call.1} parent=5 // pred_check_branch
        %131 = sbr.rel (%p128) target = $region24
      $region23: #{tpu_custom_call.1} parent=5 // pred_region
        %s132 = ssub.s32 %s15, 1
        %s133 = sand.u32 %s42, 1
        %s134 = scalar_lea.sflag [#allocation3], %s133
        %s135 = sand.u32 %s42, 1
        %s136 = smul.addr %s135, 48
        %s137 = scalar_lea.vmem [#allocation2], %s136
        // Predicated region
        $region25: #{tpu_custom_call.1} parent=23 // pred_check
          %p138 = pneg %p55
        $region26: #{tpu_custom_call.1} parent=23 // pred_check_branch
          %140 = sbr.rel (%p138) target = $region28
        $region27: #{tpu_custom_call.1} parent=23 // pred_region
          %142 = dma.done %s134, 768
        $region28: #{tpu_custom_call.1} parent=23 // pred_fallthru
          _
        %s143 = sand.u32 %s42, 1
        %s144 = scalar_lea.sflag [#allocation3], %s143
        %s145 = sand.u32 %s42, 1
        %s146 = smul.addr %s145, 48
        %s147 = scalar_lea.vmem [#allocation2], %s146
        %p148 = pneg %p55
        %p149 = pneg %p52
        %p150 = pneg %p83
        %p151 = pneg %p80
        %s152 = sand.u32 %s70, 1
        %s153 = scalar_lea.sflag [#allocation4], %s152
        %s154 = sand.u32 %s70, 1
        %s155 = smul.addr %s154, 48
        %s156 = scalar_lea.vmem [#allocation5], %s155
        %s157 = smul.u32 6, %s25
        %s158 = smul.u32 6, %s25
        %v159 = vld [vmem:[%s137] sm:$0xff]
        %v160 = vld [vmem:[%s137 + $0x8] sm:$0xff]
        %v161 = vld [vmem:[%s137 + $0x10] sm:$0xff]
        %v162 = vld [vmem:[%s137 + $0x18] sm:$0xff]
        %v163 = vld [vmem:[%s137 + $0x20] sm:$0xff]
        %v164 = vld [vmem:[%s137 + $0x28] sm:$0xff]
        %165 = vst [vmem:[%s156] sm:$0xff] %v159
        %166 = vst [vmem:[%s156 + $0x8] sm:$0xff] %v160
        %167 = vst [vmem:[%s156 + $0x10] sm:$0xff] %v161
        %168 = vst [vmem:[%s156 + $0x18] sm:$0xff] %v162
        %169 = vst [vmem:[%s156 + $0x20] sm:$0xff] %v163
        %170 = vst [vmem:[%s156 + $0x28] sm:$0xff] %v164
        %s171 = sand.u32 %s70, 1
        %s172 = scalar_lea.sflag [#allocation4], %s171
        %s173 = sand.u32 %s70, 1
        %s174 = smul.addr %s173, 48
        %s175 = scalar_lea.vmem [#allocation5], %s174
        // Predicated region
        $region29: #{tpu_custom_call.1} parent=23 // pred_check
          %p176 = pneg %p80
        $region30: #{tpu_custom_call.1} parent=23 // pred_check_branch
          %178 = sbr.rel (%p176) target = $region32
        $region31: #{tpu_custom_call.1} parent=23 // pred_region
          %s179 = smul.u32 6, %s25
          %181 = vsyncadd %s172, 0
          %s182 = smul.addr %s24, 6
          %s183 = sadd.s32 %s179, %s182
          %s184 = smul.addr %s183, 8
          %s185 = scalar_lea.hbm %s3, %s184
          %s186 = sshll.u32 %s175, 4
          %s187 = int_to_ptr.vmem [resolvable:$true] %s186
          %s188 = sshll.u32 %s185, 4
          %s189 = int_to_ptr.hbm [resolvable:$true] %s188
          %194 = dma.vmem_to_hbm [thread:$0]  %s187, 768, %s189, %s172, 128, 128, 8
        $region32: #{tpu_custom_call.1} parent=23 // pred_fallthru
          _
      $region24: #{tpu_custom_call.1} parent=5 // pred_fallthru
        _
      %p195 = scmp.le.s32.totalorder 2, %s15
      // Predicated region
      $region33: #{tpu_custom_call.1} parent=5 // pred_check
        %p196 = pneg %p195
      $region34: #{tpu_custom_call.1} parent=5 // pred_check_branch
        %198 = sbr.rel (%p196) target = $region36
      $region35: #{tpu_custom_call.1} parent=5 // pred_region
        %s199 = ssub.s32 %s15, 2
        // Predicated region
        $region37: #{tpu_custom_call.1} parent=35 // pred_check
          %p200 = pneg %p86
        $region38: #{tpu_custom_call.1} parent=35 // pred_check_branch
          %202 = sbr.rel (%p200) target = $region40
        $region39: #{tpu_custom_call.1} parent=35 // pred_region
          %s203 = sand.u32 %s71, 1
          %s204 = scalar_lea.sflag [#allocation4], %s203
          %s205 = sand.u32 %s71, 1
          %s206 = smul.addr %s205, 48
          %s207 = scalar_lea.vmem [#allocation5], %s206
          %209 = dma.done %s204, 768
        $region40: #{tpu_custom_call.1} parent=35 // pred_fallthru
          _
      $region36: #{tpu_custom_call.1} parent=5 // pred_fallthru
        _
    $region6: #{tpu_custom_call.1} parent=1 // loop_footer
      %s19 = sadd.s32 1, %s15
    $region7: #{tpu_custom_call.1} parent=1 // loop_footer_branch
      %14 = sbr.rel target = $region3
    $region8: #{tpu_custom_call.1} parent=1 // loop_exit
      _
    %210 = vsyncpa [#allocation3], 1
    %s211 = scalar_lea.sflag [#allocation3], 1
    %212 = vsyncpa %s211, 1
    %213 = vsyncpa [#allocation4], 1
    %s214 = scalar_lea.sflag [#allocation4], 1
    %215 = vsyncpa %s214, 1

</llo_original>
